<compile_context>
chip_gen: v7x
topology: tpu7x:2x2x1
jax: 0.10.0
libtpu: 0.0.40
codegen_flags: <defaults>
</compile_context>

<pallas_src>
import functools

import jax
import jax.numpy as jnp
import numpy as np
from jax import lax
from jax.experimental import pallas as pl
from jax.experimental.pallas import tpu as pltpu


def _fused_phase_conv_kernel(taps_ref, w_ref, b_ref, out_ref):
    """One fused sub-pixel-phase matmul tile of the k=3/s=2 transposed conv.

    taps_ref: (TP, 4*Cin) bf16  — per pixel: [x(i,j) | x(i,j+1) | x(i+1,j) | x(i+1,j+1)]
    w_ref:    (4*Cin, 4*Cout) bf16 block weight (9 non-zero (Cin,Cout) tap->phase blocks)
    b_ref:    (1, 4*Cout) f32 bias replicated per phase
    out_ref:  (TP, 4*Cout) bf16 — phases [(0,0),(0,1),(1,0),(1,1)] packed on the lane axis
    """
    acc = jnp.dot(taps_ref[...], w_ref[...], preferred_element_type=jnp.float32)
    out_ref[...] = (acc + b_ref[...]).astype(out_ref.dtype)


def _round_up(x, m):
    return ((x + m - 1) // m) * m


def _vmem_limit_and_budget():
    """Generation-aware scoped-VMEM limit and tile budget."""
    cap = 64 * 1024 * 1024  # conservative default = v7x per-TC VMEM
    try:
        info = pltpu.get_tpu_info()
        cap = int(getattr(info, "vmem_capacity_bytes", cap) or cap)
    except Exception:  # defensive: fall back to the v7x floor (safe on all gens)
        pass
    limit = min((cap * 3) // 4, 96 * 1024 * 1024)   # ~48 MiB on v7x, ~96 MiB on v5e/v6e
    budget = (limit * 2) // 3                       # headroom for Mosaic scratch / pipeline
    return limit, budget


def _pick_tile_rows(p, n, kin, kout, budget_bytes):
    """Largest 16-aligned row tile whose padded, double-buffered working set fits."""
    kin_lanes = _round_up(kin, 128)    # bf16 taps: lane dim pads to 128
    kout_lanes = _round_up(kout, 128)  # bf16 out:  lane dim pads to 128
    wgt_bytes = _round_up(kin, 16) * kout_lanes * 2   # bf16 (4Cin, 4Cout) weight
    bias_bytes = 8 * kout_lanes * 4                   # f32 (1, 4Cout) pads to 8 sublanes

    def tile_bytes(t):
        tpad = _round_up(t, 16)                       # bf16 sublane packing
        inp = tpad * kin_lanes * 2
        out = tpad * kout_lanes * 2
        return 2 * (inp + out + wgt_bytes + bias_bytes)   # BlockSpec double-buffering

    tp = min(p, 2048)
    while tp > 16 and tile_bytes(tp) > budget_bytes:
        tp //= 2
    if tp < p:
        tp = max(16, (tp // 16) * 16)
    tp = min(tp, p)
    # v7x megacore: if the batch axis alone can't feed 2 TensorCores, force >= 2 row blocks.
    if n == 1 and tp >= p and p > 16:
        tp = min(p, max(16, _round_up(-(-p // 2), 16)))
    return tp


def upsample_concatenation(x_down, x_skip, weight, bias,
                           kernel_size=3, stride=2, padding=1, output_padding=1,
                           tile_rows=None):
    """ConvTranspose2d(x_down; weight, bias), then concat with x_skip along channels.

    x_down: (N, Cin, H, W)   x_skip: (N, Cs, 2H, 2W)
    weight: (Cin, Cout, K, K) (PyTorch ConvTranspose2d layout)   bias: (Cout,)
    returns: (N, Cout + Cs, 2H, 2W)
    """
    n, cin, h, w = x_down.shape
    _, cs, ho, wo = x_skip.shape
    cout = weight.shape[1]
    # Sub-pixel decomposition below is specialized to the module's defaults.
    assert (kernel_size, stride, padding, output_padding) == (3, 2, 1, 1), \
        "kernel specialized to ConvTranspose2d(k=3, stride=2, pad=1, out_pad=1)"
    assert ho == 2 * h and wo == 2 * w

    out_dtype = x_down.dtype
    p = h * w
    kin, kout = 4 * cin, 4 * cout

    # ---- single fused tap stream: (N, P, 4*Cin) bf16 = [x(i,j)|x(i,j+1)|x(i+1,j)|x(i+1,j+1)]
    x_nhwc = jnp.transpose(x_down, (0, 2, 3, 1)).astype(jnp.bfloat16)   # (N,H,W,Cin)
    xp = jnp.pad(x_nhwc, ((0, 0), (0, 1), (0, 1), (0, 0)))              # zero halo bottom/right
    taps = jnp.concatenate(
        [xp[:, :h, :w, :], xp[:, :h, 1:, :], xp[:, 1:, :w, :], xp[:, 1:, 1:, :]],
        axis=-1).reshape(n, p, kin)

    # ---- fused block weight (4*Cin, 4*Cout): rows = taps, cols = phases.
    #   y[2i,  2j  ] = x[i,j]@W[1,1]
    #   y[2i,  2j+1] = x[i,j+1]@W[1,0] + x[i,j]@W[1,2]
    #   y[2i+1,2j  ] = x[i+1,j]@W[0,1] + x[i,j]@W[2,1]
    #   y[2i+1,2j+1] = x[i+1,j+1]@W[0,0] + x[i+1,j]@W[0,2] + x[i,j+1]@W[2,0] + x[i,j]@W[2,2]
    wk = jnp.transpose(weight, (2, 3, 0, 1)).astype(jnp.float32)        # (3,3,Cin,Cout)
    w_all = jnp.zeros((4, cin, 4, cout), jnp.float32)                   # (tap, ci, phase, co)
    w_all = w_all.at[0, :, 0].set(wk[1, 1])
    w_all = w_all.at[0, :, 1].set(wk[1, 2])
    w_all = w_all.at[0, :, 2].set(wk[2, 1])
    w_all = w_all.at[0, :, 3].set(wk[2, 2])
    w_all = w_all.at[1, :, 1].set(wk[1, 0])
    w_all = w_all.at[1, :, 3].set(wk[2, 0])
    w_all = w_all.at[2, :, 2].set(wk[0, 1])
    w_all = w_all.at[2, :, 3].set(wk[0, 2])
    w_all = w_all.at[3, :, 3].set(wk[0, 0])
    w_all = w_all.reshape(kin, kout).astype(jnp.bfloat16)
    b_all = jnp.tile(bias.astype(jnp.float32), 4).reshape(1, kout)      # per-phase bias

    vmem_limit, vmem_budget = _vmem_limit_and_budget()
    if tile_rows is None:
        tp = _pick_tile_rows(p, n, kin, kout, vmem_budget)
    else:
        tp = min(int(tile_rows), p)
        if tp < p:
            tp = max(16, (tp // 16) * 16)
    grid = (n, pl.cdiv(p, tp))

    y4 = pl.pallas_call(
        _fused_phase_conv_kernel,
        out_shape=jax.ShapeDtypeStruct((n, p, kout), jnp.bfloat16),
        grid_spec=pltpu.PrefetchScalarGridSpec(
            num_scalar_prefetch=0,
            grid=grid,
            in_specs=[
                pl.BlockSpec((None, tp, kin), lambda b, j: (b, j, 0)),
                pl.BlockSpec((kin, kout), lambda b, j: (0, 0)),   # grid-invariant weight
                pl.BlockSpec((1, kout), lambda b, j: (0, 0)),     # grid-invariant bias
            ],
            out_specs=pl.BlockSpec((None, tp, kout), lambda b, j: (b, j, 0)),
        ),
        compiler_params=pltpu.CompilerParams(
            dimension_semantics=("parallel", "parallel"),
            vmem_limit_bytes=vmem_limit,
        ),
    )(taps, w_all, b_all)

    # depth-to-space (phases -> 2x2 sub-pixels) + NHWC->NCHW, cast folded in, then concat.
    y = y4.reshape(n, h, w, 2, 2, cout)            # (n, i, j, ph, pw, c)
    y = jnp.transpose(y, (0, 5, 1, 3, 2, 4))       # (n, c, i, ph, j, pw)
    y = y.reshape(n, cout, ho, wo).astype(out_dtype)
    # TODO(synk): if the consumer accepts NHWC, drop this transpose and concat on the last
    # axis instead — the epilogue is an extra full HBM pass on this memory-bound layer.
    return jnp.concatenate([y, x_skip.astype(out_dtype)], axis=1)


def _reference(x_down, x_skip, weight, bias, stride=2, padding=1, output_padding=1):
    """Pure-JAX reference: ConvTranspose2d via lhs-dilated conv, then concat."""
    k = weight.shape[-1]
    w_flip = jnp.transpose(jnp.flip(weight, axis=(2, 3)), (1, 0, 2, 3))  # OIHW
    pad_lo = k - 1 - padding
    pad_hi = k - 1 - padding + output_padding
    y = lax.conv_general_dilated(
        x_down, w_flip, window_strides=(1, 1),
        padding=((pad_lo, pad_hi), (pad_lo, pad_hi)),
        lhs_dilation=(stride, stride),
        dimension_numbers=("NCHW", "OIHW", "NCHW"),
        precision=lax.Precision.HIGHEST)
    y = y + bias.reshape(1, -1, 1, 1)
    return jnp.concatenate([y, x_skip], axis=1)


if __name__ == "__main__":
    key = jax.random.PRNGKey(0)
    k1, k2, k3, k4 = jax.random.split(key, 4)
    n, cin, cout, cs, h, w = 2, 4, 4, 4, 16, 16

    x_down = jax.random.normal(k1, (n, cin, h, w), jnp.float32)
    x_skip = jax.random.normal(k2, (n, cs, 2 * h, 2 * w), jnp.float32)
    weight = jax.random.normal(k3, (cin, cout, 3, 3), jnp.float32) * 0.1
    bias = jax.random.normal(k4, (cout,), jnp.float32) * 0.1

    ref = _reference(x_down, x_skip, weight, bias)

    # 1) explicit tile_rows=64 exercises the multi-tile pipeline path (P=256 -> grid (2, 4)).
    fn_tiled = jax.jit(functools.partial(upsample_concatenation, tile_rows=64))
    out_tiled = jax.block_until_ready(fn_tiled(x_down, x_skip, weight, bias))
    assert out_tiled.shape == (n, cout + cs, 2 * h, 2 * w), out_tiled.shape
    # bf16 MXU operands + bf16 kernel output (f32 accumulation) -> bf16-level tolerance.
    np.testing.assert_allclose(np.asarray(out_tiled), np.asarray(ref), atol=2e-2, rtol=2e-2)

    # 2) auto tile picking exercises the padding-/generation-aware VMEM budgeting path.
    fn_auto = jax.jit(upsample_concatenation)
    out_auto = jax.block_until_ready(fn_auto(x_down, x_skip, weight, bias))
    np.testing.assert_allclose(np.asarray(out_auto), np.asarray(ref), atol=2e-2, rtol=2e-2)

    print("KERNEL_OK")
</pallas_src>

<mosaic_0001>
module attributes {stable_mosaic.version = 11 : i64} {
  func.func @_fused_phase_conv_kernel(%arg0: i32, %arg1: i32, %arg2: memref<1x64x16xbf16, #tpu.memory_space<vmem>>, %arg3: memref<16x16xbf16, #tpu.memory_space<vmem>>, %arg4: memref<1x16xf32, #tpu.memory_space<vmem>>, %arg5: memref<1x64x16xbf16, #tpu.memory_space<vmem>>) attributes {dimension_semantics = [#tpu.dimension_semantics<parallel>, #tpu.dimension_semantics<parallel>], iteration_bounds = array<i64: 2, 4>, scalar_prefetch = 0 : i64, scratch_operands = 0 : i64, tpu.core_type = #tpu.core_type<tc>, window_params = [{transform_indices = @transform_0, window_bounds = array<i64: 1, 64, 16>}, {pipeline_mode = #tpu.pipeline_mode<synchronous>, transform_indices = @transform_1, window_bounds = array<i64: 16, 16>}, {pipeline_mode = #tpu.pipeline_mode<synchronous>, transform_indices = @transform_2, window_bounds = array<i64: 1, 16>}, {transform_indices = @transform_3, window_bounds = array<i64: 1, 64, 16>}]} {
    %c0 = arith.constant 0 : index
    %c0_0 = arith.constant 0 : index
    %c0_1 = arith.constant 0 : index
    %0 = vector.load %arg2[%c0, %c0_0, %c0_1] : memref<1x64x16xbf16, #tpu.memory_space<vmem>>, vector<1x64x16xbf16>
    %1 = vector.shape_cast %0 : vector<1x64x16xbf16> to vector<64x16xbf16>
    %c0_2 = arith.constant 0 : index
    %c0_3 = arith.constant 0 : index
    %2 = vector.load %arg3[%c0_2, %c0_3] : memref<16x16xbf16, #tpu.memory_space<vmem>>, vector<16x16xbf16>
    %cst = arith.constant dense<0.000000e+00> : vector<64x16xf32>
    %3 = tpu.matmul %1, %2, %cst {dimension_numbers = #tpu.dot_dimension_numbers<[1], [0], [0], [1], [0, 0, 1, 1], [], []>} : vector<64x16xbf16>, vector<16x16xbf16>, vector<64x16xf32> -> vector<64x16xf32>
    %c0_4 = arith.constant 0 : index
    %c0_5 = arith.constant 0 : index
    %4 = vector.load %arg4[%c0_4, %c0_5] : memref<1x16xf32, #tpu.memory_space<vmem>>, vector<1x16xf32>
    %5 = vector.broadcast %4 : vector<1x16xf32> to vector<64x16xf32>
    %6 = arith.addf %3, %5 : vector<64x16xf32>
    %7 = arith.truncf %6 : vector<64x16xf32> to vector<64x16xbf16>
    %c0_6 = arith.constant 0 : index
    %c0_7 = arith.constant 0 : index
    %c0_8 = arith.constant 0 : index
    %8 = vector.load %arg5[%c0_6, %c0_7, %c0_8] : memref<1x64x16xbf16, #tpu.memory_space<vmem>>, vector<1x64x16xbf16>
    %9 = vector.shape_cast %8 : vector<1x64x16xbf16> to vector<64x16xbf16>
    %10 = vector.shape_cast %7 : vector<64x16xbf16> to vector<1x64x16xbf16>
    tpu.vector_store %arg5[%c0_6, %c0_7, %c0_8], %10 {strides = array<i32>} : memref<1x64x16xbf16, #tpu.memory_space<vmem>>, vector<1x64x16xbf16>,
    return
  }
  func.func @transform_0(%arg0: i32, %arg1: i32) -> (i32, i32, i32) {
    %c0_i32 = arith.constant 0 : i32
    %c0_i32_0 = arith.constant 0 : i32
    return %arg0, %arg1, %c0_i32 : i32, i32, i32
  }
  func.func @transform_1(%arg0: i32, %arg1: i32) -> (i32, i32) {
    %c0_i32 = arith.constant 0 : i32
    %c0_i32_0 = arith.constant 0 : i32
    %c0_i32_1 = arith.constant 0 : i32
    return %c0_i32, %c0_i32_0 : i32, i32
  }
  func.func @transform_2(%arg0: i32, %arg1: i32) -> (i32, i32) {
    %c0_i32 = arith.constant 0 : i32
    %c0_i32_0 = arith.constant 0 : i32
    %c0_i32_1 = arith.constant 0 : i32
    return %c0_i32, %c0_i32_0 : i32, i32
  }
  func.func @transform_3(%arg0: i32, %arg1: i32) -> (i32, i32, i32) {
    %c0_i32 = arith.constant 0 : i32
    %c0_i32_0 = arith.constant 0 : i32
    return %arg0, %arg1, %c0_i32 : i32, i32, i32
  }
}

</mosaic_0001>

<llo_original>
// kernel: tile.8
$region0: #{tile.8}
  #allocation0 [shape = 's32[1]{0}', space=sflag, size = 0x4, scoped, tag = 'scoped memory for tile.8']
  %s0 = inlined_call_operand.vmem [shape: f32[4], index: 0, kind: input, shape index: {}]
  %s1 = inlined_call_operand.vmem [shape: f32[4,4], index: 1, kind: output, shape index: {}]
  // Predicated region
  $region2: #{tile.8} parent=0 // pred_check
    _
  $region3: #{tile.8} parent=0 // pred_check_branch
    %3 = sbr.rel (0) target = $region5
  $region4: #{tile.8} parent=0 // pred_region
    _
  $region5: #{tile.8} parent=0 // pred_fallthru
    _
  %v4 = vld [vmem:[%s0] ss:$0 sm:$0xff]
  %5 = vst [vmem:[%s1] sm:$0xf] %v4

// kernel: tile.9
$region0: #{tile.9}
  %s0 = inlined_call_operand.vmem [shape: f32[4,4], index: 0, kind: input, shape index: {}]
  %s1 = inlined_call_operand.vmem [shape: f32[1,16], index: 1, kind: output, shape index: {}]
  $region1: #{tile.9} parent=0
    #allocation0 [shape = 'u8[4096]{0}', space=vmem, size = 0x1000, scoped, tag = 'scoped mem for output reshape']
    #allocation1 [shape = 'u8[4096]{0}', space=vmem, size = 0x1000, scoped, tag = 'scoped mem for input reshape']
    %s3 = sshllo.u32 0, 4
    %v4 = vld [vmem:[%s0] sm:%s3]
    %5 = vst [vmem:[#allocation1] sm:%s3] %v4
    %v6 = vld [vmem:[#allocation1] sm:$0x1]
    %vm7 = vcmask 31744
    %8 = vst.msk [vmem:[#allocation0] sm:$0x1] %vm7, %v6
    %s9 = scalar_lea.vmem [#allocation1], 3
    %v10 = vld [vmem:[%s9] sm:$0x1]
    %11 = vrot.lane.b32.xlu0 %v10, 12
    %v12 = vpop.permute.xlu0 %11
    %vm13 = vcmask 130144
    %14 = vst.msk [vmem:[#allocation0] sm:$0x1] %vm13, %v12
    %s15 = scalar_lea.vmem [#allocation1], 2
    %v16 = vld [vmem:[%s15] sm:$0x1]
    %17 = vrot.lane.b32.xlu0 %v16, 8
    %v18 = vpop.permute.xlu0 %17
    %vm19 = vcmask 97344
    %20 = vst.msk [vmem:[#allocation0] sm:$0x1] %vm19, %v18
    %s21 = scalar_lea.vmem [#allocation1], 1
    %v22 = vld [vmem:[%s21] sm:$0x1]
    %23 = vrot.lane.b32.xlu0 %v22, 4
    %v24 = vpop.permute.xlu0 %23
    %vm25 = vcmask 64544
    %26 = vst.msk [vmem:[#allocation0] sm:$0x1] %vm25, %v24
    %s28 = sshllo.u32 0, 1
    %v30 = vld [vmem:[#allocation0] sm:%s28]
    %s31 = sshllo.u32 0, 1
    %32 = vst [vmem:[%s1] sm:%s31] %v30

// kernel: upsample_concatenation.1
$region0: #{upsample_concatenation.1}
  #allocation0 [shape = 'u32[]', space=smem, size = 0x4, offset = 0x4, fixed_abs, tag = 'smem constant byte address 0x4 - core index']
  #allocation1 [shape = 'u32[144,128]{1,0:T(1,128)}', space=vmem, size = 0x12000, scoped, tag = 'internal scratch']
  %s0 = inlined_call_operand.vmem [shape: bf16[2,256,16], index: 0, kind: input, shape index: {}]
  %s1 = inlined_call_operand.vmem [shape: bf16[16,16], index: 1, kind: input, shape index: {}]
  %s2 = inlined_call_operand.vmem [shape: f32[1,16], index: 2, kind: input, shape index: {}]
  %s3 = inlined_call_operand.vmem [shape: bf16[2,256,16], index: 3, kind: output, shape index: {}]
  %s4 = sld [smem:[#allocation0]]
  $region45: #{upsample_concatenation.1} parent=0
    _
  %s6 = ssub.s32 1, %s4
  %s7 = scalar_select 0, %s6, %s4
  loop: start=0, step=1, limit=10
  $region2: #{upsample_concatenation.1} parent=0 // loop_pre_header
    _
  $region3: #{upsample_concatenation.1} parent=0 // loop_header
    %s9 = sphi 0, %s13
    %p10 = scmp.ge.s32.totalorder %s9, 10
    %s16 = sphi 0, %s28
    %s17 = sphi 0, %s24
    %s18 = sphi 0, %s16
    %s19 = sphi 0, %s17
    %s20 = sphi 0, %s18
    %s21 = sphi 0, %s19
    %s33 = sphi 0, %s35
    %s36 = sphi 0, %s33
    %s37 = sphi 0, %s36
    %s53 = sphi 0, %s37
    %s57 = sphi 0, %s57
    %s59 = sphi 0, %s57
    %s60 = sphi 0, %s59
    %s74 = sphi 0, %s60
    %s78 = sphi 0, %s78
    %s80 = sphi 0, %s78
    %s81 = sphi 0, %s80
    %s95 = sphi 0, %s81
    %s103 = sphi 0, %s105
    %s106 = sphi 0, %s103
    %s107 = sphi 0, %s106
    %s123 = sphi 0, %s107
  $region4: #{upsample_concatenation.1} parent=0 // loop_header_branch
    %12 = sbr.rel (%p10) target = $region8
  $region5: #{upsample_concatenation.1} parent=0 // loop_body
    %s14 = ssub.s32 %s9, 1
    %s15 = ssub.s32 %s9, 2
    %s22 = sadd.s32 1, %s17
    %p23 = scmp.ge.s32.totalorder %s22, 4
    %s24 = scalar_select %p23, 0, %s22
    %s25 = sadd.s32 1, %s16
    %s26 = scalar_select %p23, %s25, %s16
    %p27 = scmp.ge.s32.totalorder %s26, 2
    %s28 = scalar_select %p27, 0, %s26
    %s29 = ssub.s32 %s16, %s28
    %s30 = ssub.s32 %s17, %s24
    %s31 = sor.u32 %s29, %s30
    %p32 = scmp.eq.s32.totalorder %s31, 0
    %s34 = sadd.s32 %s33, 1
    %s35 = scalar_select %p32, %s33, %s34
    %p38 = pneg %p32
    %p39 = scmp.eq.s32.totalorder %s9, 7
    %p40 = por %p38, %p39
    %p41 = scmp.ne.s32.totalorder %s33, %s36
    %p42 = scmp.eq.s32.totalorder %s9, 0
    %p43 = por %p41, %p42
    %p44 = scmp.ne.s32.totalorder %s33, %s36
    %p45 = scmp.eq.s32.totalorder %s14, 7
    %p46 = por %p44, %p45
    %p47 = scmp.ne.s32.totalorder %s36, %s37
    %p48 = scmp.eq.s32.totalorder %s14, 0
    %p49 = por %p47, %p48
    %p50 = scmp.ne.s32.totalorder %s36, %s37
    %p51 = scmp.eq.s32.totalorder %s15, 7
    %p52 = por %p50, %p51
    %p54 = scmp.ne.s32.totalorder %s37, %s53
    %p55 = scmp.eq.s32.totalorder %s15, 0
    %p56 = por %p54, %p55
    %s58 = sadd.s32 %s57, 1
    %p61 = scmp.eq.s32.totalorder %s9, 7
    %p62 = scmp.ne.s32.totalorder %s57, %s59
    %p63 = scmp.eq.s32.totalorder %s9, 0
    %p64 = por %p62, %p63
    %p65 = scmp.ne.s32.totalorder %s57, %s59
    %p66 = scmp.eq.s32.totalorder %s14, 7
    %p67 = por %p65, %p66
    %p68 = scmp.ne.s32.totalorder %s59, %s60
    %p69 = scmp.eq.s32.totalorder %s14, 0
    %p70 = por %p68, %p69
    %p71 = scmp.ne.s32.totalorder %s59, %s60
    %p72 = scmp.eq.s32.totalorder %s15, 7
    %p73 = por %p71, %p72
    %p75 = scmp.ne.s32.totalorder %s60, %s74
    %p76 = scmp.eq.s32.totalorder %s15, 0
    %p77 = por %p75, %p76
    %s79 = sadd.s32 %s78, 1
    %p82 = scmp.eq.s32.totalorder %s9, 7
    %p83 = scmp.ne.s32.totalorder %s78, %s80
    %p84 = scmp.eq.s32.totalorder %s9, 0
    %p85 = por %p83, %p84
    %p86 = scmp.ne.s32.totalorder %s78, %s80
    %p87 = scmp.eq.s32.totalorder %s14, 7
    %p88 = por %p86, %p87
    %p89 = scmp.ne.s32.totalorder %s80, %s81
    %p90 = scmp.eq.s32.totalorder %s14, 0
    %p91 = por %p89, %p90
    %p92 = scmp.ne.s32.totalorder %s80, %s81
    %p93 = scmp.eq.s32.totalorder %s15, 7
    %p94 = por %p92, %p93
    %p96 = scmp.ne.s32.totalorder %s81, %s95
    %p97 = scmp.eq.s32.totalorder %s15, 0
    %p98 = por %p96, %p97
    %s99 = ssub.s32 %s16, %s28
    %s100 = ssub.s32 %s17, %s24
    %s101 = sor.u32 %s99, %s100
    %p102 = scmp.eq.s32.totalorder %s101, 0
    %s104 = sadd.s32 %s103, 1
    %s105 = scalar_select %p102, %s103, %s104
    %p108 = pneg %p102
    %p109 = scmp.eq.s32.totalorder %s9, 7
    %p110 = por %p108, %p109
    %p111 = scmp.ne.s32.totalorder %s103, %s106
    %p112 = scmp.eq.s32.totalorder %s9, 0
    %p113 = por %p111, %p112
    %p114 = scmp.ne.s32.totalorder %s103, %s106
    %p115 = scmp.eq.s32.totalorder %s14, 7
    %p116 = por %p114, %p115
    %p117 = scmp.ne.s32.totalorder %s106, %s107
    %p118 = scmp.eq.s32.totalorder %s14, 0
    %p119 = por %p117, %p118
    %p120 = scmp.ne.s32.totalorder %s106, %s107
    %p121 = scmp.eq.s32.totalorder %s15, 7
    %p122 = por %p120, %p121
    %p124 = scmp.ne.s32.totalorder %s107, %s123
    %p125 = scmp.eq.s32.totalorder %s15, 0
    %p126 = por %p124, %p125
    %p127 = scmp.le.s32.totalorder 1, %s9
    %p128 = scmp.lt.s32.totalorder %s9, 9
    %p129 = pnand %p127, %p128
    %p130 = pneg %p129
    // Predicated region
    $region9: #{upsample_concatenation.1} parent=5 // pred_check
      _
    $region10: #{upsample_concatenation.1} parent=5 // pred_check_branch
      %132 = sbr.rel (%p129) target = $region12
    $region11: #{upsample_concatenation.1} parent=5 // pred_region
      %s133 = ssub.s32 %s9, 1
      // Predicated region
      $region13: #{upsample_concatenation.1} parent=11 // pred_check
        %p134 = pneg %p70
      $region14: #{upsample_concatenation.1} parent=11 // pred_check_branch
        %136 = sbr.rel (%p134) target = $region16
      $region15: #{upsample_concatenation.1} parent=11 // pred_region
        _
      $region16: #{upsample_concatenation.1} parent=11 // pred_fallthru
        _
      // Predicated region
      $region17: #{upsample_concatenation.1} parent=11 // pred_check
        %p137 = pneg %p91
      $region18: #{upsample_concatenation.1} parent=11 // pred_check_branch
        %139 = sbr.rel (%p137) target = $region20
      $region19: #{upsample_concatenation.1} parent=11 // pred_region
        _
      $region20: #{upsample_concatenation.1} parent=11 // pred_fallthru
        _
    $region12: #{upsample_concatenation.1} parent=5 // pred_fallthru
      _
    %p140 = scmp.lt.s32.totalorder %s9, 8
    // Predicated region
    $region21: #{upsample_concatenation.1} parent=5 // pred_check
      %p141 = pneg %p140
    $region22: #{upsample_concatenation.1} parent=5 // pred_check_branch
      %143 = sbr.rel (%p141) target = $region24
    $region23: #{upsample_concatenation.1} parent=5 // pred_region
      // Predicated region
      $region25: #{upsample_concatenation.1} parent=23 // pred_check
        %p144 = pneg %p43
      $region26: #{upsample_concatenation.1} parent=23 // pred_check_branch
        %146 = sbr.rel (%p144) target = $region28
      $region27: #{upsample_concatenation.1} parent=23 // pred_region
        %s147 = smul.u32 8, %s17
        %p148 = scmp.lt.s32.totalorder %s16, 1
        %s149 = scalar_select %p148, %s16, 1
        %p150 = scmp.lt.s32.totalorder %s147, 31
        %s151 = scalar_select %p150, %s147, 31
        %s152 = smul.addr %s149, 32
        %s153 = sadd.s32 %s151, %s152
        %s154 = smul.addr %s153, 4
        %s155 = scalar_lea.vmem %s0, %s154
        %s156 = smul.u32 8, %s17
      $region28: #{upsample_concatenation.1} parent=23 // pred_fallthru
        _
    $region24: #{upsample_concatenation.1} parent=5 // pred_fallthru
      _
    %p157 = scmp.le.s32.totalorder 1, %s9
    %p158 = scmp.lt.s32.totalorder %s9, 9
    %p159 = pnand %p157, %p158
    %p160 = pneg %p159
    // Predicated region
    $region29: #{upsample_concatenation.1} parent=5 // pred_check
      _
    $region30: #{upsample_concatenation.1} parent=5 // pred_check_branch
      %162 = sbr.rel (%p159) target = $region32
    $region31: #{upsample_concatenation.1} parent=5 // pred_region
      %s163 = ssub.s32 %s9, 1
      %s164 = smul.u32 8, %s19
      %p165 = scmp.lt.s32.totalorder %s18, 1
      %s166 = scalar_select %p165, %s18, 1
      %p167 = scmp.lt.s32.totalorder %s164, 31
      %s168 = scalar_select %p167, %s164, 31
      %s169 = smul.addr %s166, 32
      %s170 = sadd.s32 %s168, %s169
      %s171 = smul.addr %s170, 4
      %s172 = scalar_lea.vmem %s0, %s171
      %p173 = pneg %p49
      %p174 = pneg %p46
      %p175 = pneg %p70
      %p176 = pneg %p67
      %p177 = pneg %p91
      %p178 = pneg %p88
      %p179 = pneg %p119
      %p180 = pneg %p116
      %s181 = smul.u32 8, %s19
      %p182 = scmp.lt.s32.totalorder %s18, 1
      %s183 = scalar_select %p182, %s18, 1
      %p184 = scmp.lt.s32.totalorder %s181, 31
      %s185 = scalar_select %p184, %s181, 31
      %s186 = smul.addr %s183, 32
      %s187 = sadd.s32 %s185, %s186
      %s188 = smul.addr %s187, 4
      %s189 = scalar_lea.vmem %s3, %s188
      %s190 = smul.u32 8, %s19
      %p191 = scmp.lt.s32.totalorder %s18, 1
      %s192 = scalar_select %p191, %s18, 1
      %p193 = scmp.lt.s32.totalorder %s190, 31
      %s194 = scalar_select %p193, %s190, 31
      %s195 = smul.addr %s192, 32
      %s196 = sadd.s32 %s194, %s195
      %s197 = smul.addr %s196, 4
      %s198 = scalar_lea.vmem %s0, %s197
      %s199 = smul.u32 8, %s19
      %s200 = smul.u32 8, %s19
      %p201 = scmp.lt.s32.totalorder %s18, 1
      %s202 = scalar_select %p201, %s18, 1
      %p203 = scmp.lt.s32.totalorder %s200, 31
      %s204 = scalar_select %p203, %s200, 31
      %s205 = smul.addr %s202, 32
      %s206 = sadd.s32 %s204, %s205
      %s207 = smul.addr %s206, 4
      %s208 = scalar_lea.vmem %s3, %s207
      %s209 = smul.u32 8, %s19
      %v211 = vld [vmem:[%s198] sm:$0xf]
      %v212 = vld [vmem:[%s198 + $0x4] sm:$0xf]
      %v213 = vld [vmem:[%s198 + $0x8] sm:$0xf]
      %v214 = vld [vmem:[%s198 + $0xc] sm:$0xf]
      %v215 = vld [vmem:[%s198 + $0x10] sm:$0xf]
      %v216 = vld [vmem:[%s198 + $0x14] sm:$0xf]
      %v217 = vld [vmem:[%s198 + $0x18] sm:$0xf]
      %v218 = vld [vmem:[%s198 + $0x1c] sm:$0xf]
      %v219 = vld [vmem:[%s1] sm:$0xf]
      %v220 = vld [vmem:[%s1 + $0x4] sm:$0xf]
      %v221 = vld [vmem:[%s2] sm:$0x1]
      %v223 = vlaneseq
      %v224 = vshrl.u32 %v223, 7
      %v225 = vsub.s32 0, %v224
      %v226 = vrot.slane %v221, %v225
      %v236 = vunpack.c.l.b16 %v211
      %v237 = vunpack.c.l.b16 %v212
      %v238 = vunpack.c.l.b16 %v213
      %v239 = vunpack.c.l.b16 %v214
      %v240 = vunpack.c.l.b16 %v215
      %v241 = vunpack.c.l.b16 %v216
      %v242 = vunpack.c.l.b16 %v217
      %v243 = vunpack.c.l.b16 %v218
      %v244 = vpack.c.b16 %v237, %v236
      %v245 = vpack.c.b16 %v239, %v238
      %v246 = vpack.c.b16 %v241, %v240
      %v247 = vpack.c.b16 %v243, %v242
      %v250 = vunpack.c.l.b16 %v219
      %v251 = vunpack.c.l.b16 %v220
      %v252 = vpack.c.b16 %v251, %v250
      %vm254 = vcmask 130048
      %v256 = vsel %vm254, %v244, 0
      %v259 = vsel %vm254, %v245, 0
      %v262 = vsel %vm254, %v246, 0
      %v265 = vsel %vm254, %v247, 0
      %267 = vmatprep.subr.bf16.mxu0 0
      %268 = vmatpush1.bf16.msra.mxu0 %v252
      %269 = vmatprep.subr.bf16.mxu0 0
      %270 = vmatpush1.bf16.msra.mxu0 0
      %271 = vmatprep.subr.bf16.mxu0 0
      %272 = vmatpush1.bf16.msra.mxu0 0
      %273 = vmatprep.subr.bf16.mxu0 0
      %274 = vmatpush1.bf16.msra.mxu0 0
      %275 = vmatprep.subr.bf16.mxu0 0
      %276 = vmatpush1.bf16.msra.mxu0 0
      %277 = vmatprep.subr.bf16.mxu0 0
      %278 = vmatpush1.bf16.msra.mxu0 0
      %279 = vmatprep.subr.bf16.mxu0 0
      %280 = vmatpush1.bf16.msra.mxu0 0
      %281 = vmatprep.subr.bf16.mxu0 0
      %282 = vmatpush1.bf16.msra.mxu0 0
      %283 = vmatprep.subr.bf16.mxu0 0
      %284 = vmatpush1.bf16.msra.mxu0 0
      %285 = vmatprep.subr.bf16.mxu0 0
      %286 = vmatpush1.bf16.msra.mxu0 0
      %287 = vmatprep.subr.bf16.mxu0 0
      %288 = vmatpush1.bf16.msra.mxu0 0
      %289 = vmatprep.subr.bf16.mxu0 0
      %290 = vmatpush1.bf16.msra.mxu0 0
      %291 = vmatprep.subr.bf16.mxu0 0
      %292 = vmatpush1.bf16.msra.mxu0 0
      %293 = vmatprep.subr.bf16.mxu0 0
      %294 = vmatpush1.bf16.msra.mxu0 0
      %295 = vmatprep.subr.bf16.mxu0 0
      %296 = vmatpush1.bf16.msra.mxu0 0
      %297 = vmatprep.subr.bf16.mxu0 0
      %298 = vmatpush1.bf16.msra.mxu0 0
      %299 = vmatprep.mubr.bf16.mxu0 0
      %300 = vmatmul.mubr.bf16.gmra.mrb[0].mxu0 %v256
      %v301 = vpop.f32.mrb[0].mxu0
      %v302 = vadd.f32 %v226, %v301
      %v303 = vpop.f32.mrb[0].mxu0
      %v304 = vpop.f32.mrb[0].mxu0
      %v305 = vadd.f32 %v226, %v304
      %v306 = vpop.f32.mrb[0].mxu0
      %307 = vmatprep.mubr.bf16.mxu0 0
      %308 = vmatmul.mubr.bf16.gmra.mrb[0].mxu0 %v259
      %v309 = vpop.f32.mrb[0].mxu0
      %v310 = vadd.f32 %v226, %v309
      %v311 = vpop.f32.mrb[0].mxu0
      %v312 = vpop.f32.mrb[0].mxu0
      %v313 = vadd.f32 %v226, %v312
      %v314 = vpop.f32.mrb[0].mxu0
      %315 = vmatprep.mubr.bf16.mxu0 0
      %316 = vmatmul.mubr.bf16.gmra.mrb[0].mxu0 %v262
      %v317 = vpop.f32.mrb[0].mxu0
      %v318 = vadd.f32 %v226, %v317
      %v319 = vpop.f32.mrb[0].mxu0
      %v320 = vpop.f32.mrb[0].mxu0
      %v321 = vadd.f32 %v226, %v320
      %v322 = vpop.f32.mrb[0].mxu0
      %323 = vmatprep.mubr.bf16.mxu0 0
      %324 = vmatmul.mubr.bf16.gmra.mrb[0].mxu0 %v265
      %v325 = vpop.f32.mrb[0].mxu0
      %v326 = vadd.f32 %v226, %v325
      %v327 = vpop.f32.mrb[0].mxu0
      %v328 = vpop.f32.mrb[0].mxu0
      %v329 = vadd.f32 %v226, %v328
      %v330 = vpop.f32.mrb[0].mxu0
      %331 = vdwg.mxu0
      %v332 = vpack.c.bf16 %v305, %v302
      %v333 = vpack.c.bf16 %v313, %v310
      %v334 = vpack.c.bf16 %v321, %v318
      %v335 = vpack.c.bf16 %v329, %v326
      %v340 = vunpack.c.l.b16 %v332
      %v341 = vunpack.c.h.b16 %v332
      %v342 = vunpack.c.l.b16 %v333
      %v343 = vunpack.c.h.b16 %v333
      %v344 = vunpack.c.l.b16 %v334
      %v345 = vunpack.c.h.b16 %v334
      %v346 = vunpack.c.l.b16 %v335
      %v347 = vunpack.c.h.b16 %v335
      %v348 = vpack.c.b16 %v340, %v340
      %v349 = vpack.c.b16 %v341, %v341
      %v350 = vpack.c.b16 %v342, %v342
      %v351 = vpack.c.b16 %v343, %v343
      %v352 = vpack.c.b16 %v344, %v344
      %v353 = vpack.c.b16 %v345, %v345
      %v354 = vpack.c.b16 %v346, %v346
      %v355 = vpack.c.b16 %v347, %v347
      %vm364 = vcmask 125952
      %365 = vst.msk [vmem:[%s208] sm:$0xf] %vm364, %v348
      %366 = vst.msk [vmem:[%s208 + $0x4] sm:$0xf] %vm364, %v349
      %367 = vst.msk [vmem:[%s208 + $0x8] sm:$0xf] %vm364, %v350
      %368 = vst.msk [vmem:[%s208 + $0xc] sm:$0xf] %vm364, %v351
      %369 = vst.msk [vmem:[%s208 + $0x10] sm:$0xf] %vm364, %v352
      %370 = vst.msk [vmem:[%s208 + $0x14] sm:$0xf] %vm364, %v353
      %371 = vst.msk [vmem:[%s208 + $0x18] sm:$0xf] %vm364, %v354
      %372 = vst.msk [vmem:[%s208 + $0x1c] sm:$0xf] %vm364, %v355
      %s373 = smul.u32 8, %s19
      %p374 = scmp.lt.s32.totalorder %s18, 1
      %s375 = scalar_select %p374, %s18, 1
      %p376 = scmp.lt.s32.totalorder %s373, 31
      %s377 = scalar_select %p376, %s373, 31
      %s378 = smul.addr %s375, 32
      %s379 = sadd.s32 %s377, %s378
      %s380 = smul.addr %s379, 4
      %s381 = scalar_lea.vmem %s3, %s380
      // Predicated region
      $region33: #{upsample_concatenation.1} parent=31 // pred_check
        %p382 = pneg %p116
      $region34: #{upsample_concatenation.1} parent=31 // pred_check_branch
        %384 = sbr.rel (%p382) target = $region36
      $region35: #{upsample_concatenation.1} parent=31 // pred_region
        %s385 = smul.u32 8, %s19
      $region36: #{upsample_concatenation.1} parent=31 // pred_fallthru
        _
    $region32: #{upsample_concatenation.1} parent=5 // pred_fallthru
      _
    %p386 = scmp.le.s32.totalorder 2, %s9
    // Predicated region
    $region37: #{upsample_concatenation.1} parent=5 // pred_check
      %p387 = pneg %p386
    $region38: #{upsample_concatenation.1} parent=5 // pred_check_branch
      %389 = sbr.rel (%p387) target = $region40
    $region39: #{upsample_concatenation.1} parent=5 // pred_region
      %s390 = ssub.s32 %s9, 2
      // Predicated region
      $region41: #{upsample_concatenation.1} parent=39 // pred_check
        %p391 = pneg %p122
      $region42: #{upsample_concatenation.1} parent=39 // pred_check_branch
        %393 = sbr.rel (%p391) target = $region44
      $region43: #{upsample_concatenation.1} parent=39 // pred_region
        %s394 = smul.u32 8, %s21
        %p395 = scmp.lt.s32.totalorder %s20, 1
        %s396 = scalar_select %p395, %s20, 1
        %p397 = scmp.lt.s32.totalorder %s394, 31
        %s398 = scalar_select %p397, %s394, 31
        %s399 = smul.addr %s396, 32
        %s400 = sadd.s32 %s398, %s399
        %s401 = smul.addr %s400, 4
        %s402 = scalar_lea.vmem %s3, %s401
      $region44: #{upsample_concatenation.1} parent=39 // pred_fallthru
        _
    $region40: #{upsample_concatenation.1} parent=5 // pred_fallthru
      _
  $region6: #{upsample_concatenation.1} parent=0 // loop_footer
    %s13 = sadd.s32 1, %s9
  $region7: #{upsample_concatenation.1} parent=0 // loop_footer_branch
    %8 = sbr.rel target = $region3
  $region8: #{upsample_concatenation.1} parent=0 // loop_exit
    _

</llo_original>
